<compile_context>
chip_gen: v6e
topology: v6e:2x2x1
jax: 0.10.0
libtpu: 0.0.40
codegen_flags: <defaults>
</compile_context>

<pallas_src>
import functools

import jax
import jax.numpy as jnp
from jax.experimental import pallas as pl
from jax.experimental.pallas import tpu as pltpu


def _round_up(n, m):
    return ((n + m - 1) // m) * m


def _choose_tile_b(batch, cap):
    # Big tiles amortize the per-grid-step overhead (important on v5e/v6e)...
    tile = min(cap, _round_up(batch, 8))
    # ...but for large batches keep >=4 grid steps so the "parallel" batch
    # axis can be sharded across v7x's two TensorCores (no-op on v5e/v6e).
    quarter = _round_up(-(-batch // 4), 8)
    if quarter >= 256:
        tile = min(tile, quarter)
    return max(tile, 8)


def encoder_kernel(x_ref, w1_ref, b1_ref, w2_ref, b2_ref, w3_ref, b3_ref,
                   gamma_ref, beta_ref, out_ref, *, matmul_dtype):
    # ---- MLP hot path: 3 MXU matmuls (bf16 operands, f32 accumulation) ----
    x = x_ref[...].astype(matmul_dtype)          # cast in-kernel (no wrapper pass)
    h1 = jnp.dot(x, w1_ref[...], preferred_element_type=jnp.float32) + b1_ref[...]
    h1 = jnp.maximum(h1, 0.0)
    h2 = jnp.dot(h1.astype(matmul_dtype), w2_ref[...],
                 preferred_element_type=jnp.float32) + b2_ref[...]
    h2 = jnp.maximum(h2, 0.0)
    h_fc = jnp.dot(h2.astype(matmul_dtype), w3_ref[...],
                   preferred_element_type=jnp.float32) + b3_ref[...]

    # ---- LayerNorm over the real feature axis (no padding -> no masks) ----
    mean = jnp.mean(h_fc, axis=-1, keepdims=True)
    centered = h_fc - mean
    var = jnp.mean(centered * centered, axis=-1, keepdims=True)
    inv_std = jax.lax.rsqrt(var + 1e-5)          # EUP slot; eps matches PyTorch
    out_ref[...] = centered * inv_std * gamma_ref[...] + beta_ref[...]


def prepare_params(params, matmul_dtype=jnp.bfloat16):
    """One-time (cacheable) conversion: MXU weights -> bf16, rest f32 (1, F)."""
    w1, b1, w2, b2, w3, b3, gamma, beta = params
    as_row_f32 = lambda a: a.reshape(1, -1).astype(jnp.float32)
    return (w1.astype(matmul_dtype), as_row_f32(b1),
            w2.astype(matmul_dtype), as_row_f32(b2),
            w3.astype(matmul_dtype), as_row_f32(b3),
            as_row_f32(gamma), as_row_f32(beta))


def encoder_forward(x, prepared_params, *, tile_b=1024):
    """Encoder forward pass with a batch-tiled Pallas kernel (no wrapper ops)."""
    w1, b1, w2, b2, w3, b3, gamma, beta = prepared_params
    batch, in_dim = x.shape
    h1_dim = w1.shape[1]
    h2_dim = w2.shape[1]
    feat_dim = w3.shape[1]

    TILE_B = _choose_tile_b(batch, tile_b)
    grid = (pl.cdiv(batch, TILE_B),)
    # Note: ragged last block is fine — OOB input rows read unspecified data,
    # but every row's LayerNorm is independent and OOB output rows are
    # discarded by Pallas (no cross-row reduction anywhere).
    # (If deployment forces TILE_B <= 512 with many grid steps,
    #  pipeline_mode=pl.Buffered(3) on the x/out specs hides DMA issue latency.)

    kernel = functools.partial(encoder_kernel, matmul_dtype=w1.dtype)

    const = lambda i: (0, 0)        # params stay VMEM-resident across the grid
    in_specs = [
        pl.BlockSpec((TILE_B, in_dim), lambda i: (i, 0)),   # x tile (pipelined)
        pl.BlockSpec((in_dim, h1_dim), const),              # w1
        pl.BlockSpec((1, h1_dim), const),                   # b1
        pl.BlockSpec((h1_dim, h2_dim), const),              # w2
        pl.BlockSpec((1, h2_dim), const),                   # b2
        pl.BlockSpec((h2_dim, feat_dim), const),            # w3
        pl.BlockSpec((1, feat_dim), const),                 # b3
        pl.BlockSpec((1, feat_dim), const),                 # gamma
        pl.BlockSpec((1, feat_dim), const),                 # beta
    ]
    out_specs = pl.BlockSpec((TILE_B, feat_dim), lambda i: (i, 0))

    flops = 2 * batch * (in_dim * h1_dim + h1_dim * h2_dim + h2_dim * feat_dim)
    bytes_accessed = int(
        x.size * x.dtype.itemsize
        + sum(a.size * a.dtype.itemsize
              for a in (w1, b1, w2, b2, w3, b3, gamma, beta))
        + batch * feat_dim * 4)

    return pl.pallas_call(
        kernel,
        out_shape=jax.ShapeDtypeStruct((batch, feat_dim), jnp.float32),
        grid=grid,
        in_specs=in_specs,
        out_specs=out_specs,
        compiler_params=pltpu.CompilerParams(
            dimension_semantics=("parallel",)),      # megacore sharding on v7x
        cost_estimate=pl.CostEstimate(
            flops=flops, transcendentals=batch, bytes_accessed=bytes_accessed),
    )(x, w1, b1, w2, b2, w3, b3, gamma, beta)


def init_params(key, obs_shape, feature_dim, hidden_szs=(64, 64)):
    """Deterministic synthetic init (PyTorch-like uniform fan-in scaling)."""
    sizes = [obs_shape] + list(hidden_szs) + [feature_dim]
    params = []
    for fan_in, fan_out in zip(sizes[:-1], sizes[1:]):
        key, kw, kb = jax.random.split(key, 3)
        bound = 1.0 / jnp.sqrt(jnp.float32(fan_in))
        w = jax.random.uniform(kw, (fan_in, fan_out), jnp.float32, -bound, bound)
        b = jax.random.uniform(kb, (1, fan_out), jnp.float32, -bound, bound)
        params.extend([w, b])
    params.append(jnp.ones((1, feature_dim), jnp.float32))    # LayerNorm weight
    params.append(jnp.zeros((1, feature_dim), jnp.float32))   # LayerNorm bias
    return tuple(params)


def reference_forward(x, params, matmul_dtype=jnp.float32):
    """Pure-JAX reference (optionally mirroring the kernel's bf16 matmuls)."""
    w1, b1, w2, b2, w3, b3, gamma, beta = params

    def dot(a, w):
        return jnp.dot(a.astype(matmul_dtype), w.astype(matmul_dtype),
                       preferred_element_type=jnp.float32)

    h = jnp.maximum(dot(x, w1) + b1, 0.0)
    h = jnp.maximum(dot(h, w2) + b2, 0.0)
    h = dot(h, w3) + b3
    mean = jnp.mean(h, axis=-1, keepdims=True)
    var = jnp.mean((h - mean) ** 2, axis=-1, keepdims=True)
    return (h - mean) / jnp.sqrt(var + 1e-5) * gamma + beta


if __name__ == "__main__":
    batch = 64
    obs_shape = 32
    feature_dim = 32
    hidden_szs = (64, 64)

    key = jax.random.PRNGKey(0)
    key, kx = jax.random.split(key)
    x = jax.random.normal(kx, (batch, obs_shape), jnp.float32)
    params = init_params(key, obs_shape, feature_dim, hidden_szs)

    # One-time param prep (bf16 weight cast) hoisted out of the forward pass.
    prepared = prepare_params(params)

    out = jax.block_until_ready(encoder_forward(x, prepared))
    assert out.shape == (batch, feature_dim)
    assert bool(jnp.all(jnp.isfinite(out)))

    # Tight check against a reference that mirrors the kernel's bf16 matmul /
    # f32 accumulation (validates tiling and the unmasked LayerNorm).
    ref_bf16 = reference_forward(x, params, matmul_dtype=jnp.bfloat16)
    assert jnp.allclose(out, ref_bf16, atol=2e-3, rtol=2e-3)

    # Loose check against pure-f32 module semantics (bf16 quantization only).
    ref_f32 = reference_forward(x, params, matmul_dtype=jnp.float32)
    assert jnp.allclose(out, ref_f32, atol=1e-1, rtol=1e-1)

    print("KERNEL_OK")
</pallas_src>

<mosaic_0001>
module attributes {stable_mosaic.version = 11 : i64} {
  func.func @encoder_kernel(%arg0: i32, %arg1: memref<64x32xf32, #tpu.memory_space<vmem>>, %arg2: memref<32x64xbf16, #tpu.memory_space<vmem>>, %arg3: memref<1x64xf32, #tpu.memory_space<vmem>>, %arg4: memref<64x64xbf16, #tpu.memory_space<vmem>>, %arg5: memref<1x64xf32, #tpu.memory_space<vmem>>, %arg6: memref<64x32xbf16, #tpu.memory_space<vmem>>, %arg7: memref<1x32xf32, #tpu.memory_space<vmem>>, %arg8: memref<1x32xf32, #tpu.memory_space<vmem>>, %arg9: memref<1x32xf32, #tpu.memory_space<vmem>>, %arg10: memref<64x32xf32, #tpu.memory_space<vmem>>) attributes {dimension_semantics = [#tpu.dimension_semantics<parallel>], iteration_bounds = array<i64: 1>, scalar_prefetch = 0 : i64, scratch_operands = 0 : i64, tpu.core_type = #tpu.core_type<tc>, window_params = [{transform_indices = @transform_0, window_bounds = array<i64: 64, 32>}, {pipeline_mode = #tpu.pipeline_mode<synchronous>, transform_indices = @transform_1, window_bounds = array<i64: 32, 64>}, {pipeline_mode = #tpu.pipeline_mode<synchronous>, transform_indices = @transform_2, window_bounds = array<i64: 1, 64>}, {pipeline_mode = #tpu.pipeline_mode<synchronous>, transform_indices = @transform_3, window_bounds = array<i64: 64, 64>}, {pipeline_mode = #tpu.pipeline_mode<synchronous>, transform_indices = @transform_4, window_bounds = array<i64: 1, 64>}, {pipeline_mode = #tpu.pipeline_mode<synchronous>, transform_indices = @transform_5, window_bounds = array<i64: 64, 32>}, {pipeline_mode = #tpu.pipeline_mode<synchronous>, transform_indices = @transform_6, window_bounds = array<i64: 1, 32>}, {pipeline_mode = #tpu.pipeline_mode<synchronous>, transform_indices = @transform_7, window_bounds = array<i64: 1, 32>}, {pipeline_mode = #tpu.pipeline_mode<synchronous>, transform_indices = @transform_8, window_bounds = array<i64: 1, 32>}, {transform_indices = @transform_9, window_bounds = array<i64: 64, 32>}]} {
    %c0 = arith.constant 0 : index
    %c0_0 = arith.constant 0 : index
    %0 = vector.load %arg1[%c0, %c0_0] : memref<64x32xf32, #tpu.memory_space<vmem>>, vector<64x32xf32>
    %1 = arith.truncf %0 : vector<64x32xf32> to vector<64x32xbf16>
    %c0_1 = arith.constant 0 : index
    %c0_2 = arith.constant 0 : index
    %2 = vector.load %arg2[%c0_1, %c0_2] : memref<32x64xbf16, #tpu.memory_space<vmem>>, vector<32x64xbf16>
    %cst = arith.constant dense<0.000000e+00> : vector<64x64xf32>
    %3 = tpu.matmul %1, %2, %cst {dimension_numbers = #tpu.dot_dimension_numbers<[1], [0], [0], [1], [0, 0, 1, 1], [], []>} : vector<64x32xbf16>, vector<32x64xbf16>, vector<64x64xf32> -> vector<64x64xf32>
    %c0_3 = arith.constant 0 : index
    %c0_4 = arith.constant 0 : index
    %4 = vector.load %arg3[%c0_3, %c0_4] : memref<1x64xf32, #tpu.memory_space<vmem>>, vector<1x64xf32>
    %5 = vector.broadcast %4 : vector<1x64xf32> to vector<64x64xf32>
    %6 = arith.addf %3, %5 : vector<64x64xf32>
    %cst_5 = arith.constant 0.000000e+00 : f32
    %7 = vector.broadcast %cst_5 : f32 to vector<64x64xf32>
    %8 = arith.maximumf %6, %7 : vector<64x64xf32>
    %9 = arith.truncf %8 : vector<64x64xf32> to vector<64x64xbf16>
    %c0_6 = arith.constant 0 : index
    %c0_7 = arith.constant 0 : index
    %10 = vector.load %arg4[%c0_6, %c0_7] : memref<64x64xbf16, #tpu.memory_space<vmem>>, vector<64x64xbf16>
    %cst_8 = arith.constant dense<0.000000e+00> : vector<64x64xf32>
    %11 = tpu.matmul %9, %10, %cst_8 {dimension_numbers = #tpu.dot_dimension_numbers<[1], [0], [0], [1], [0, 0, 1, 1], [], []>} : vector<64x64xbf16>, vector<64x64xbf16>, vector<64x64xf32> -> vector<64x64xf32>
    %c0_9 = arith.constant 0 : index
    %c0_10 = arith.constant 0 : index
    %12 = vector.load %arg5[%c0_9, %c0_10] : memref<1x64xf32, #tpu.memory_space<vmem>>, vector<1x64xf32>
    %13 = vector.broadcast %12 : vector<1x64xf32> to vector<64x64xf32>
    %14 = arith.addf %11, %13 : vector<64x64xf32>
    %cst_11 = arith.constant 0.000000e+00 : f32
    %15 = vector.broadcast %cst_11 : f32 to vector<64x64xf32>
    %16 = arith.maximumf %14, %15 : vector<64x64xf32>
    %17 = arith.truncf %16 : vector<64x64xf32> to vector<64x64xbf16>
    %c0_12 = arith.constant 0 : index
    %c0_13 = arith.constant 0 : index
    %18 = vector.load %arg6[%c0_12, %c0_13] : memref<64x32xbf16, #tpu.memory_space<vmem>>, vector<64x32xbf16>
    %cst_14 = arith.constant dense<0.000000e+00> : vector<64x32xf32>
    %19 = tpu.matmul %17, %18, %cst_14 {dimension_numbers = #tpu.dot_dimension_numbers<[1], [0], [0], [1], [0, 0, 1, 1], [], []>} : vector<64x64xbf16>, vector<64x32xbf16>, vector<64x32xf32> -> vector<64x32xf32>
    %c0_15 = arith.constant 0 : index
    %c0_16 = arith.constant 0 : index
    %20 = vector.load %arg7[%c0_15, %c0_16] : memref<1x32xf32, #tpu.memory_space<vmem>>, vector<1x32xf32>
    %21 = vector.broadcast %20 : vector<1x32xf32> to vector<64x32xf32>
    %22 = arith.addf %19, %21 : vector<64x32xf32>
    %cst_17 = arith.constant dense<0.000000e+00> : vector<64xf32>
    %23 = vector.multi_reduction <add>, %22, %cst_17 [1] : vector<64x32xf32> to vector<64xf32>
    %24 = vector.shape_cast %23 : vector<64xf32> to vector<64x1xf32>
    %cst_18 = arith.constant 3.200000e+01 : f32
    %25 = vector.broadcast %cst_18 : f32 to vector<64x1xf32>
    %26 = arith.divf %24, %25 : vector<64x1xf32>
    %27 = vector.broadcast %26 : vector<64x1xf32> to vector<64x32xf32>
    %28 = arith.subf %22, %27 : vector<64x32xf32>
    %29 = arith.mulf %28, %28 : vector<64x32xf32>
    %cst_19 = arith.constant dense<0.000000e+00> : vector<64xf32>
    %30 = vector.multi_reduction <add>, %29, %cst_19 [1] : vector<64x32xf32> to vector<64xf32>
    %31 = vector.shape_cast %30 : vector<64xf32> to vector<64x1xf32>
    %cst_20 = arith.constant 3.200000e+01 : f32
    %32 = vector.broadcast %cst_20 : f32 to vector<64x1xf32>
    %33 = arith.divf %31, %32 : vector<64x1xf32>
    %cst_21 = arith.constant 9.99999974E-6 : f32
    %34 = vector.broadcast %cst_21 : f32 to vector<64x1xf32>
    %35 = arith.addf %33, %34 : vector<64x1xf32>
    %36 = math.rsqrt %35 : vector<64x1xf32>
    %37 = vector.broadcast %36 : vector<64x1xf32> to vector<64x32xf32>
    %38 = arith.mulf %28, %37 : vector<64x32xf32>
    %c0_22 = arith.constant 0 : index
    %c0_23 = arith.constant 0 : index
    %39 = vector.load %arg8[%c0_22, %c0_23] : memref<1x32xf32, #tpu.memory_space<vmem>>, vector<1x32xf32>
    %40 = vector.broadcast %39 : vector<1x32xf32> to vector<64x32xf32>
    %41 = arith.mulf %38, %40 : vector<64x32xf32>
    %c0_24 = arith.constant 0 : index
    %c0_25 = arith.constant 0 : index
    %42 = vector.load %arg9[%c0_24, %c0_25] : memref<1x32xf32, #tpu.memory_space<vmem>>, vector<1x32xf32>
    %43 = vector.broadcast %42 : vector<1x32xf32> to vector<64x32xf32>
    %44 = arith.addf %41, %43 : vector<64x32xf32>
    %c0_26 = arith.constant 0 : index
    %c0_27 = arith.constant 0 : index
    %45 = vector.load %arg10[%c0_26, %c0_27] : memref<64x32xf32, #tpu.memory_space<vmem>>, vector<64x32xf32>
    tpu.vector_store %arg10[%c0_26, %c0_27], %44 {strides = array<i32>} : memref<64x32xf32, #tpu.memory_space<vmem>>, vector<64x32xf32>,
    return
  }
  func.func @transform_0(%arg0: i32) -> (i32, i32) {
    %c0_i32 = arith.constant 0 : i32
    %c0_i32_0 = arith.constant 0 : i32
    return %arg0, %c0_i32 : i32, i32
  }
  func.func @transform_1(%arg0: i32) -> (i32, i32) {
    %c0_i32 = arith.constant 0 : i32
    %c0_i32_0 = arith.constant 0 : i32
    %c0_i32_1 = arith.constant 0 : i32
    return %c0_i32, %c0_i32_0 : i32, i32
  }
  func.func @transform_2(%arg0: i32) -> (i32, i32) {
    %c0_i32 = arith.constant 0 : i32
    %c0_i32_0 = arith.constant 0 : i32
    %c0_i32_1 = arith.constant 0 : i32
    return %c0_i32, %c0_i32_0 : i32, i32
  }
  func.func @transform_3(%arg0: i32) -> (i32, i32) {
    %c0_i32 = arith.constant 0 : i32
    %c0_i32_0 = arith.constant 0 : i32
    %c0_i32_1 = arith.constant 0 : i32
    return %c0_i32, %c0_i32_0 : i32, i32
  }
  func.func @transform_4(%arg0: i32) -> (i32, i32) {
    %c0_i32 = arith.constant 0 : i32
    %c0_i32_0 = arith.constant 0 : i32
    %c0_i32_1 = arith.constant 0 : i32
    return %c0_i32, %c0_i32_0 : i32, i32
  }
  func.func @transform_5(%arg0: i32) -> (i32, i32) {
    %c0_i32 = arith.constant 0 : i32
    %c0_i32_0 = arith.constant 0 : i32
    %c0_i32_1 = arith.constant 0 : i32
    return %c0_i32, %c0_i32_0 : i32, i32
  }
  func.func @transform_6(%arg0: i32) -> (i32, i32) {
    %c0_i32 = arith.constant 0 : i32
    %c0_i32_0 = arith.constant 0 : i32
    %c0_i32_1 = arith.constant 0 : i32
    return %c0_i32, %c0_i32_0 : i32, i32
  }
  func.func @transform_7(%arg0: i32) -> (i32, i32) {
    %c0_i32 = arith.constant 0 : i32
    %c0_i32_0 = arith.constant 0 : i32
    %c0_i32_1 = arith.constant 0 : i32
    return %c0_i32, %c0_i32_0 : i32, i32
  }
  func.func @transform_8(%arg0: i32) -> (i32, i32) {
    %c0_i32 = arith.constant 0 : i32
    %c0_i32_0 = arith.constant 0 : i32
    %c0_i32_1 = arith.constant 0 : i32
    return %c0_i32, %c0_i32_0 : i32, i32
  }
  func.func @transform_9(%arg0: i32) -> (i32, i32) {
    %c0_i32 = arith.constant 0 : i32
    %c0_i32_0 = arith.constant 0 : i32
    return %arg0, %c0_i32 : i32, i32
  }
}

</mosaic_0001>

<llo_original>
// kernel: tpu_custom_call.1
$region0: #{tpu_custom_call.1}
  #allocation0 [shape = 'u32[]', space=smem, size = 0x4, offset = 0x4, fixed_abs, tag = 'smem constant byte address 0x4 - core index']
  #allocation1 [shape = 'u32[144,128]{1,0:T(1,128)}', space=vmem, size = 0x12000, scoped, tag = 'internal scratch']
  %s0 = inlined_call_operand.vmem [shape: f32[64,32], index: 0, kind: input, shape index: {}]
  %s1 = inlined_call_operand.vmem [shape: bf16[32,64], index: 1, kind: input, shape index: {}]
  %s2 = inlined_call_operand.vmem [shape: f32[1,64], index: 2, kind: input, shape index: {}]
  %s3 = inlined_call_operand.vmem [shape: bf16[64,64], index: 3, kind: input, shape index: {}]
  %s4 = inlined_call_operand.vmem [shape: f32[1,64], index: 4, kind: input, shape index: {}]
  %s5 = inlined_call_operand.vmem [shape: bf16[64,32], index: 5, kind: input, shape index: {}]
  %s6 = inlined_call_operand.vmem [shape: f32[1,32], index: 6, kind: input, shape index: {}]
  %s7 = inlined_call_operand.vmem [shape: f32[1,32], index: 7, kind: input, shape index: {}]
  %s8 = inlined_call_operand.vmem [shape: f32[1,32], index: 8, kind: input, shape index: {}]
  %s9 = inlined_call_operand.vmem [shape: f32[64,32], index: 9, kind: output, shape index: {}]
  %s10 = sld [smem:[#allocation0]]
  $region46: #{tpu_custom_call.1} parent=0
    _
  %s12 = ssub.s32 1, %s10
  %s13 = scalar_select 0, %s12, %s10
  // Predicated region
  $region2: #{tpu_custom_call.1} parent=0 // pred_check
    _
  $region3: #{tpu_custom_call.1} parent=0 // pred_check_branch
    %15 = sbr.rel (0) target = $region5
  $region4: #{tpu_custom_call.1} parent=0 // pred_region
    _
  $region5: #{tpu_custom_call.1} parent=0 // pred_fallthru
    _
  // Predicated region
  $region6: #{tpu_custom_call.1} parent=0 // pred_check
    _
  $region7: #{tpu_custom_call.1} parent=0 // pred_check_branch
    %17 = sbr.rel (0) target = $region9
  $region8: #{tpu_custom_call.1} parent=0 // pred_region
    _
  $region9: #{tpu_custom_call.1} parent=0 // pred_fallthru
    _
  // Predicated region
  $region10: #{tpu_custom_call.1} parent=0 // pred_check
    _
  $region11: #{tpu_custom_call.1} parent=0 // pred_check_branch
    %19 = sbr.rel (0) target = $region13
  $region12: #{tpu_custom_call.1} parent=0 // pred_region
    _
  $region13: #{tpu_custom_call.1} parent=0 // pred_fallthru
    _
  // Predicated region
  $region14: #{tpu_custom_call.1} parent=0 // pred_check
    _
  $region15: #{tpu_custom_call.1} parent=0 // pred_check_branch
    %21 = sbr.rel (0) target = $region17
  $region16: #{tpu_custom_call.1} parent=0 // pred_region
    _
  $region17: #{tpu_custom_call.1} parent=0 // pred_fallthru
    _
  // Predicated region
  $region18: #{tpu_custom_call.1} parent=0 // pred_check
    _
  $region19: #{tpu_custom_call.1} parent=0 // pred_check_branch
    %23 = sbr.rel (0) target = $region21
  $region20: #{tpu_custom_call.1} parent=0 // pred_region
    _
  $region21: #{tpu_custom_call.1} parent=0 // pred_fallthru
    _
  // Predicated region
  $region22: #{tpu_custom_call.1} parent=0 // pred_check
    _
  $region23: #{tpu_custom_call.1} parent=0 // pred_check_branch
    %25 = sbr.rel (0) target = $region25
  $region24: #{tpu_custom_call.1} parent=0 // pred_region
    _
  $region25: #{tpu_custom_call.1} parent=0 // pred_fallthru
    _
  // Predicated region
  $region26: #{tpu_custom_call.1} parent=0 // pred_check
    _
  $region27: #{tpu_custom_call.1} parent=0 // pred_check_branch
    %27 = sbr.rel (0) target = $region29
  $region28: #{tpu_custom_call.1} parent=0 // pred_region
    _
  $region29: #{tpu_custom_call.1} parent=0 // pred_fallthru
    _
  // Predicated region
  $region30: #{tpu_custom_call.1} parent=0 // pred_check
    _
  $region31: #{tpu_custom_call.1} parent=0 // pred_check_branch
    %29 = sbr.rel (0) target = $region33
  $region32: #{tpu_custom_call.1} parent=0 // pred_region
    _
  $region33: #{tpu_custom_call.1} parent=0 // pred_fallthru
    _
  // Predicated region
  $region34: #{tpu_custom_call.1} parent=0 // pred_check
    _
  $region35: #{tpu_custom_call.1} parent=0 // pred_check_branch
    %31 = sbr.rel (0) target = $region37
  $region36: #{tpu_custom_call.1} parent=0 // pred_region
    _
  $region37: #{tpu_custom_call.1} parent=0 // pred_fallthru
    _
  %v33 = vld [vmem:[%s0] sm:$0xff]
  %v34 = vld [vmem:[%s0 + $0x8] sm:$0xff]
  %v35 = vld [vmem:[%s0 + $0x10] sm:$0xff]
  %v36 = vld [vmem:[%s0 + $0x18] sm:$0xff]
  %v37 = vld [vmem:[%s0 + $0x20] sm:$0xff]
  %v38 = vld [vmem:[%s0 + $0x28] sm:$0xff]
  %v39 = vld [vmem:[%s0 + $0x30] sm:$0xff]
  %v40 = vld [vmem:[%s0 + $0x38] sm:$0xff]
  %v41 = vpack.c.bf16 %v34, %v33
  %v42 = vpack.c.bf16 %v36, %v35
  %v43 = vpack.c.bf16 %v38, %v37
  %v44 = vpack.c.bf16 %v40, %v39
  %v45 = vld [vmem:[%s1] sm:$0xf]
  %v46 = vld [vmem:[%s1 + $0x4] sm:$0xf]
  %v47 = vld [vmem:[%s1 + $0x8] sm:$0xf]
  %v48 = vld [vmem:[%s1 + $0xc] sm:$0xf]
  %v49 = vld [vmem:[%s2] sm:$0x1]
  %v51 = vlaneseq
  %v52 = vshrl.u32 %v51, 7
  %v53 = vsub.s32 0, %v52
  %v54 = vrot.slane %v49, %v53
  %v60 = vunpack.c.l.b16 %v45
  %v61 = vunpack.c.l.b16 %v46
  %v62 = vunpack.c.l.b16 %v47
  %v63 = vunpack.c.l.b16 %v48
  %v64 = vpack.c.b16 %v61, %v60
  %v65 = vpack.c.b16 %v63, %v62
  %vm68 = vcmask 261120
  %v70 = vsel %vm68, %v41, 0
  %v73 = vsel %vm68, %v42, 0
  %v76 = vsel %vm68, %v43, 0
  %v79 = vsel %vm68, %v44, 0
  %81 = vmatprep.subr.bf16.mxu0 0
  %82 = vmatpush1.bf16.msra.mxu0 0
  %83 = vmatprep.subr.bf16.mxu0 0
  %84 = vmatpush1.bf16.msra.mxu0 0
  %85 = vmatprep.subr.bf16.mxu0 0
  %86 = vmatpush1.bf16.msra.mxu0 0
  %87 = vmatprep.subr.bf16.mxu0 0
  %88 = vmatpush1.bf16.msra.mxu0 0
  %89 = vmatprep.subr.bf16.mxu0 0
  %90 = vmatpush1.bf16.msra.mxu0 0
  %91 = vmatprep.subr.bf16.mxu0 0
  %92 = vmatpush1.bf16.msra.mxu0 0
  %93 = vmatprep.subr.bf16.mxu0 0
  %94 = vmatpush1.bf16.msra.mxu0 %v65
  %95 = vmatprep.subr.bf16.mxu0 0
  %96 = vmatpush1.bf16.msra.mxu0 %v64
  %97 = vmatprep.subr.bf16.mxu0 0
  %98 = vmatpush2.bf16.msra.mxu0 0
  %99 = vmatprep.subr.bf16.mxu0 0
  %100 = vmatpush2.bf16.msra.mxu0 0
  %101 = vmatprep.subr.bf16.mxu0 0
  %102 = vmatpush2.bf16.msra.mxu0 0
  %103 = vmatprep.subr.bf16.mxu0 0
  %104 = vmatpush2.bf16.msra.mxu0 0
  %105 = vmatprep.subr.bf16.mxu0 0
  %106 = vmatpush2.bf16.msra.mxu0 0
  %107 = vmatprep.subr.bf16.mxu0 0
  %108 = vmatpush2.bf16.msra.mxu0 0
  %109 = vmatprep.subr.bf16.mxu0 0
  %110 = vmatpush2.bf16.msra.mxu0 0
  %111 = vmatprep.subr.bf16.mxu0 0
  %112 = vmatpush2.bf16.msra.mxu0 0
  %113 = vmatprep.mubr.bf16.mxu0 0
  %114 = vmatmul.mubr.bf16.gmra.mxu0 %v70
  %v115 = vpop.f32.mrf.mxu0
  %v116 = vadd.f32 %v54, %v115
  %v117 = vpop.f32.mrf.mxu0
  %v118 = vpop.f32.mrf.mxu0
  %v119 = vadd.f32 %v54, %v118
  %v120 = vpop.f32.mrf.mxu0
  %121 = vmatprep.mubr.bf16.mxu0 0
  %122 = vmatmul.mubr.bf16.gmra.mxu0 %v73
  %v123 = vpop.f32.mrf.mxu0
  %v124 = vadd.f32 %v54, %v123
  %v125 = vpop.f32.mrf.mxu0
  %v126 = vpop.f32.mrf.mxu0
  %v127 = vadd.f32 %v54, %v126
  %v128 = vpop.f32.mrf.mxu0
  %129 = vmatprep.mubr.bf16.mxu0 0
  %130 = vmatmul.mubr.bf16.gmra.mxu0 %v76
  %v131 = vpop.f32.mrf.mxu0
  %v132 = vadd.f32 %v54, %v131
  %v133 = vpop.f32.mrf.mxu0
  %v134 = vpop.f32.mrf.mxu0
  %v135 = vadd.f32 %v54, %v134
  %v136 = vpop.f32.mrf.mxu0
  %137 = vmatprep.mubr.bf16.mxu0 0
  %138 = vmatmul.mubr.bf16.gmra.mxu0 %v79
  %v139 = vpop.f32.mrf.mxu0
  %v140 = vadd.f32 %v54, %v139
  %v141 = vpop.f32.mrf.mxu0
  %v142 = vpop.f32.mrf.mxu0
  %v143 = vadd.f32 %v54, %v142
  %v144 = vpop.f32.mrf.mxu0
  %145 = vdwg.mxu0
  %v146 = vmax.f32 %v116, 0.0
  %v147 = vmax.f32 %v119, 0.0
  %v148 = vmax.f32 %v124, 0.0
  %v149 = vmax.f32 %v127, 0.0
  %v150 = vmax.f32 %v132, 0.0
  %v151 = vmax.f32 %v135, 0.0
  %v152 = vmax.f32 %v140, 0.0
  %v153 = vmax.f32 %v143, 0.0
  %v154 = vpack.c.bf16 %v147, %v146
  %v155 = vpack.c.bf16 %v149, %v148
  %v156 = vpack.c.bf16 %v151, %v150
  %v157 = vpack.c.bf16 %v153, %v152
  %v158 = vld [vmem:[%s3] sm:$0xf]
  %v159 = vld [vmem:[%s3 + $0x4] sm:$0xf]
  %v160 = vld [vmem:[%s3 + $0x8] sm:$0xf]
  %v161 = vld [vmem:[%s3 + $0xc] sm:$0xf]
  %v162 = vld [vmem:[%s3 + $0x10] sm:$0xf]
  %v163 = vld [vmem:[%s3 + $0x14] sm:$0xf]
  %v164 = vld [vmem:[%s3 + $0x18] sm:$0xf]
  %v165 = vld [vmem:[%s3 + $0x1c] sm:$0xf]
  %v166 = vld [vmem:[%s4] sm:$0x1]
  %v168 = vlaneseq
  %v169 = vshrl.u32 %v168, 7
  %v170 = vsub.s32 0, %v169
  %v171 = vrot.slane %v166, %v170
  %v181 = vunpack.c.l.b16 %v158
  %v182 = vunpack.c.l.b16 %v159
  %v183 = vunpack.c.l.b16 %v160
  %v184 = vunpack.c.l.b16 %v161
  %v185 = vunpack.c.l.b16 %v162
  %v186 = vunpack.c.l.b16 %v163
  %v187 = vunpack.c.l.b16 %v164
  %v188 = vunpack.c.l.b16 %v165
  %v189 = vpack.c.b16 %v182, %v181
  %v190 = vpack.c.b16 %v184, %v183
  %v191 = vpack.c.b16 %v186, %v185
  %v192 = vpack.c.b16 %v188, %v187
  %vm197 = vcmask 523264
  %v199 = vsel %vm197, %v154, 0
  %v202 = vsel %vm197, %v155, 0
  %v205 = vsel %vm197, %v156, 0
  %v208 = vsel %vm197, %v157, 0
  %210 = vmatprep.subr.bf16.mxu0 0
  %211 = vmatpush1.bf16.msra.mxu0 0
  %212 = vmatprep.subr.bf16.mxu0 0
  %213 = vmatpush1.bf16.msra.mxu0 0
  %214 = vmatprep.subr.bf16.mxu0 0
  %215 = vmatpush1.bf16.msra.mxu0 0
  %216 = vmatprep.subr.bf16.mxu0 0
  %217 = vmatpush1.bf16.msra.mxu0 0
  %218 = vmatprep.subr.bf16.mxu0 0
  %219 = vmatpush1.bf16.msra.mxu0 %v192
  %220 = vmatprep.subr.bf16.mxu0 0
  %221 = vmatpush1.bf16.msra.mxu0 %v191
  %222 = vmatprep.subr.bf16.mxu0 0
  %223 = vmatpush1.bf16.msra.mxu0 %v190
  %224 = vmatprep.subr.bf16.mxu0 0
  %225 = vmatpush1.bf16.msra.mxu0 %v189
  %226 = vmatprep.subr.bf16.mxu0 0
  %227 = vmatpush2.bf16.msra.mxu0 0
  %228 = vmatprep.subr.bf16.mxu0 0
  %229 = vmatpush2.bf16.msra.mxu0 0
  %230 = vmatprep.subr.bf16.mxu0 0
  %231 = vmatpush2.bf16.msra.mxu0 0
  %232 = vmatprep.subr.bf16.mxu0 0
  %233 = vmatpush2.bf16.msra.mxu0 0
  %234 = vmatprep.subr.bf16.mxu0 0
  %235 = vmatpush2.bf16.msra.mxu0 0
  %236 = vmatprep.subr.bf16.mxu0 0
  %237 = vmatpush2.bf16.msra.mxu0 0
  %238 = vmatprep.subr.bf16.mxu0 0
  %239 = vmatpush2.bf16.msra.mxu0 0
  %240 = vmatprep.subr.bf16.mxu0 0
  %241 = vmatpush2.bf16.msra.mxu0 0
  %242 = vmatprep.mubr.bf16.mxu0 0
  %243 = vmatmul.mubr.bf16.gmra.mxu0 %v199
  %v244 = vpop.f32.mrf.mxu0
  %v245 = vadd.f32 %v171, %v244
  %v246 = vpop.f32.mrf.mxu0
  %v247 = vpop.f32.mrf.mxu0
  %v248 = vadd.f32 %v171, %v247
  %v249 = vpop.f32.mrf.mxu0
  %250 = vmatprep.mubr.bf16.mxu0 0
  %251 = vmatmul.mubr.bf16.gmra.mxu0 %v202
  %v252 = vpop.f32.mrf.mxu0
  %v253 = vadd.f32 %v171, %v252
  %v254 = vpop.f32.mrf.mxu0
  %v255 = vpop.f32.mrf.mxu0
  %v256 = vadd.f32 %v171, %v255
  %v257 = vpop.f32.mrf.mxu0
  %258 = vmatprep.mubr.bf16.mxu0 0
  %259 = vmatmul.mubr.bf16.gmra.mxu0 %v205
  %v260 = vpop.f32.mrf.mxu0
  %v261 = vadd.f32 %v171, %v260
  %v262 = vpop.f32.mrf.mxu0
  %v263 = vpop.f32.mrf.mxu0
  %v264 = vadd.f32 %v171, %v263
  %v265 = vpop.f32.mrf.mxu0
  %266 = vmatprep.mubr.bf16.mxu0 0
  %267 = vmatmul.mubr.bf16.gmra.mxu0 %v208
  %v268 = vpop.f32.mrf.mxu0
  %v269 = vadd.f32 %v171, %v268
  %v270 = vpop.f32.mrf.mxu0
  %v271 = vpop.f32.mrf.mxu0
  %v272 = vadd.f32 %v171, %v271
  %v273 = vpop.f32.mrf.mxu0
  %274 = vdwg.mxu0
  %v275 = vmax.f32 %v245, 0.0
  %v276 = vmax.f32 %v248, 0.0
  %v277 = vmax.f32 %v253, 0.0
  %v278 = vmax.f32 %v256, 0.0
  %v279 = vmax.f32 %v261, 0.0
  %v280 = vmax.f32 %v264, 0.0
  %v281 = vmax.f32 %v269, 0.0
  %v282 = vmax.f32 %v272, 0.0
  %v283 = vpack.c.bf16 %v276, %v275
  %v284 = vpack.c.bf16 %v278, %v277
  %v285 = vpack.c.bf16 %v280, %v279
  %v286 = vpack.c.bf16 %v282, %v281
  %v287 = vld [vmem:[%s5] sm:$0xf]
  %v288 = vld [vmem:[%s5 + $0x4] sm:$0xf]
  %v289 = vld [vmem:[%s5 + $0x8] sm:$0xf]
  %v290 = vld [vmem:[%s5 + $0xc] sm:$0xf]
  %v291 = vld [vmem:[%s5 + $0x10] sm:$0xf]
  %v292 = vld [vmem:[%s5 + $0x14] sm:$0xf]
  %v293 = vld [vmem:[%s5 + $0x18] sm:$0xf]
  %v294 = vld [vmem:[%s5 + $0x1c] sm:$0xf]
  %v295 = vld [vmem:[%s6] sm:$0x1]
  %v297 = vlaneseq
  %v298 = vshrl.u32 %v297, 7
  %v299 = vsub.s32 0, %v298
  %v300 = vrot.slane %v295, %v299
  %v310 = vunpack.c.l.b16 %v287
  %v311 = vunpack.c.l.b16 %v288
  %v312 = vunpack.c.l.b16 %v289
  %v313 = vunpack.c.l.b16 %v290
  %v314 = vunpack.c.l.b16 %v291
  %v315 = vunpack.c.l.b16 %v292
  %v316 = vunpack.c.l.b16 %v293
  %v317 = vunpack.c.l.b16 %v294
  %v318 = vpack.c.b16 %v311, %v310
  %v319 = vpack.c.b16 %v313, %v312
  %v320 = vpack.c.b16 %v315, %v314
  %v321 = vpack.c.b16 %v317, %v316
  %v327 = vsel %vm197, %v283, 0
  %v330 = vsel %vm197, %v284, 0
  %v333 = vsel %vm197, %v285, 0
  %v336 = vsel %vm197, %v286, 0
  %338 = vmatprep.subr.bf16.mxu0 0
  %339 = vmatpush1.bf16.msra.mxu0 0
  %340 = vmatprep.subr.bf16.mxu0 0
  %341 = vmatpush1.bf16.msra.mxu0 0
  %342 = vmatprep.subr.bf16.mxu0 0
  %343 = vmatpush1.bf16.msra.mxu0 0
  %344 = vmatprep.subr.bf16.mxu0 0
  %345 = vmatpush1.bf16.msra.mxu0 0
  %346 = vmatprep.subr.bf16.mxu0 0
  %347 = vmatpush1.bf16.msra.mxu0 %v321
  %348 = vmatprep.subr.bf16.mxu0 0
  %349 = vmatpush1.bf16.msra.mxu0 %v320
  %350 = vmatprep.subr.bf16.mxu0 0
  %351 = vmatpush1.bf16.msra.mxu0 %v319
  %352 = vmatprep.subr.bf16.mxu0 0
  %353 = vmatpush1.bf16.msra.mxu0 %v318
  %354 = vmatprep.subr.bf16.mxu0 0
  %355 = vmatpush2.bf16.msra.mxu0 0
  %356 = vmatprep.subr.bf16.mxu0 0
  %357 = vmatpush2.bf16.msra.mxu0 0
  %358 = vmatprep.subr.bf16.mxu0 0
  %359 = vmatpush2.bf16.msra.mxu0 0
  %360 = vmatprep.subr.bf16.mxu0 0
  %361 = vmatpush2.bf16.msra.mxu0 0
  %362 = vmatprep.subr.bf16.mxu0 0
  %363 = vmatpush2.bf16.msra.mxu0 0
  %364 = vmatprep.subr.bf16.mxu0 0
  %365 = vmatpush2.bf16.msra.mxu0 0
  %366 = vmatprep.subr.bf16.mxu0 0
  %367 = vmatpush2.bf16.msra.mxu0 0
  %368 = vmatprep.subr.bf16.mxu0 0
  %369 = vmatpush2.bf16.msra.mxu0 0
  %370 = vmatprep.mubr.bf16.mxu0 0
  %371 = vmatmul.mubr.bf16.gmra.mxu0 %v327
  %v372 = vpop.f32.mrf.mxu0
  %v373 = vadd.f32 %v300, %v372
  %v374 = vpop.f32.mrf.mxu0
  %v375 = vpop.f32.mrf.mxu0
  %v376 = vadd.f32 %v300, %v375
  %v377 = vpop.f32.mrf.mxu0
  %378 = vmatprep.mubr.bf16.mxu0 0
  %379 = vmatmul.mubr.bf16.gmra.mxu0 %v330
  %v380 = vpop.f32.mrf.mxu0
  %v381 = vadd.f32 %v300, %v380
  %v382 = vpop.f32.mrf.mxu0
  %v383 = vpop.f32.mrf.mxu0
  %v384 = vadd.f32 %v300, %v383
  %v385 = vpop.f32.mrf.mxu0
  %386 = vmatprep.mubr.bf16.mxu0 0
  %387 = vmatmul.mubr.bf16.gmra.mxu0 %v333
  %v388 = vpop.f32.mrf.mxu0
  %v389 = vadd.f32 %v300, %v388
  %v390 = vpop.f32.mrf.mxu0
  %v391 = vpop.f32.mrf.mxu0
  %v392 = vadd.f32 %v300, %v391
  %v393 = vpop.f32.mrf.mxu0
  %394 = vmatprep.mubr.bf16.mxu0 0
  %395 = vmatmul.mubr.bf16.gmra.mxu0 %v336
  %v396 = vpop.f32.mrf.mxu0
  %v397 = vadd.f32 %v300, %v396
  %v398 = vpop.f32.mrf.mxu0
  %v399 = vpop.f32.mrf.mxu0
  %v400 = vadd.f32 %v300, %v399
  %v401 = vpop.f32.mrf.mxu0
  %402 = vdwg.mxu0
  %v403 = vsel %vm68, %v373, 0.0
  %404 = vadd.xlane.f32.xlu0 %v403
  %v405 = vpop.xlane.xlu0 %404
  %v406 = vsel %vm68, %v376, 0.0
  %407 = vadd.xlane.f32.xlu0 %v406
  %v408 = vpop.xlane.xlu0 %407
  %v409 = vsel %vm68, %v381, 0.0
  %410 = vadd.xlane.f32.xlu0 %v409
  %v411 = vpop.xlane.xlu0 %410
  %v412 = vsel %vm68, %v384, 0.0
  %413 = vadd.xlane.f32.xlu0 %v412
  %v414 = vpop.xlane.xlu0 %413
  %v415 = vsel %vm68, %v389, 0.0
  %416 = vadd.xlane.f32.xlu0 %v415
  %v417 = vpop.xlane.xlu0 %416
  %v418 = vsel %vm68, %v392, 0.0
  %419 = vadd.xlane.f32.xlu0 %v418
  %v420 = vpop.xlane.xlu0 %419
  %v421 = vsel %vm68, %v397, 0.0
  %422 = vadd.xlane.f32.xlu0 %v421
  %v423 = vpop.xlane.xlu0 %422
  %v424 = vsel %vm68, %v400, 0.0
  %425 = vadd.xlane.f32.xlu0 %v424
  %v426 = vpop.xlane.xlu0 %425
  %v427 = vrcp.pop 32.0
  %v428 = vmul.f32 %v405, %v427
  %v429 = vmul.f32 %v408, %v427
  %v430 = vmul.f32 %v411, %v427
  %v431 = vmul.f32 %v414, %v427
  %v432 = vmul.f32 %v417, %v427
  %v433 = vmul.f32 %v420, %v427
  %v434 = vmul.f32 %v423, %v427
  %v435 = vmul.f32 %v426, %v427
  %v436 = vsub.f32 %v373, %v428
  %v437 = vsub.f32 %v376, %v429
  %v438 = vsub.f32 %v381, %v430
  %v439 = vsub.f32 %v384, %v431
  %v440 = vsub.f32 %v389, %v432
  %v441 = vsub.f32 %v392, %v433
  %v442 = vsub.f32 %v397, %v434
  %v443 = vsub.f32 %v400, %v435
  %v444 = vmul.f32 %v436, %v436
  %v445 = vmul.f32 %v437, %v437
  %v446 = vmul.f32 %v438, %v438
  %v447 = vmul.f32 %v439, %v439
  %v448 = vmul.f32 %v440, %v440
  %v449 = vmul.f32 %v441, %v441
  %v450 = vmul.f32 %v442, %v442
  %v451 = vmul.f32 %v443, %v443
  %v452 = vsel %vm68, %v444, 0.0
  %453 = vadd.xlane.f32.xlu0 %v452
  %v454 = vpop.xlane.xlu0 %453
  %v455 = vsel %vm68, %v445, 0.0
  %456 = vadd.xlane.f32.xlu0 %v455
  %v457 = vpop.xlane.xlu0 %456
  %v458 = vsel %vm68, %v446, 0.0
  %459 = vadd.xlane.f32.xlu0 %v458
  %v460 = vpop.xlane.xlu0 %459
  %v461 = vsel %vm68, %v447, 0.0
  %462 = vadd.xlane.f32.xlu0 %v461
  %v463 = vpop.xlane.xlu0 %462
  %v464 = vsel %vm68, %v448, 0.0
  %465 = vadd.xlane.f32.xlu0 %v464
  %v466 = vpop.xlane.xlu0 %465
  %v467 = vsel %vm68, %v449, 0.0
  %468 = vadd.xlane.f32.xlu0 %v467
  %v469 = vpop.xlane.xlu0 %468
  %v470 = vsel %vm68, %v450, 0.0
  %471 = vadd.xlane.f32.xlu0 %v470
  %v472 = vpop.xlane.xlu0 %471
  %v473 = vsel %vm68, %v451, 0.0
  %474 = vadd.xlane.f32.xlu0 %v473
  %v475 = vpop.xlane.xlu0 %474
  %v476 = vmul.f32 %v454, %v427
  %v477 = vmul.f32 %v457, %v427
  %v478 = vmul.f32 %v460, %v427
  %v479 = vmul.f32 %v463, %v427
  %v480 = vmul.f32 %v466, %v427
  %v481 = vmul.f32 %v469, %v427
  %v482 = vmul.f32 %v472, %v427
  %v483 = vmul.f32 %v475, %v427
  %v484 = vadd.f32 %v476, 1e-05
  %v485 = vadd.f32 %v477, 1e-05
  %v486 = vadd.f32 %v478, 1e-05
  %v487 = vadd.f32 %v479, 1e-05
  %v488 = vadd.f32 %v480, 1e-05
  %v489 = vadd.f32 %v481, 1e-05
  %v490 = vadd.f32 %v482, 1e-05
  %v491 = vadd.f32 %v483, 1e-05
  %v492 = vrsqrt.pop %v484
  %v493 = vrsqrt.pop %v485
  %v494 = vrsqrt.pop %v486
  %v495 = vrsqrt.pop %v487
  %v496 = vrsqrt.pop %v488
  %v497 = vrsqrt.pop %v489
  %v498 = vrsqrt.pop %v490
  %v499 = vrsqrt.pop %v491
  %v500 = vmul.f32 %v436, %v492
  %v501 = vmul.f32 %v437, %v493
  %v502 = vmul.f32 %v438, %v494
  %v503 = vmul.f32 %v439, %v495
  %v504 = vmul.f32 %v440, %v496
  %v505 = vmul.f32 %v441, %v497
  %v506 = vmul.f32 %v442, %v498
  %v507 = vmul.f32 %v443, %v499
  %v508 = vld [vmem:[%s7] sm:$0x1]
  %v510 = vlaneseq
  %v511 = vshrl.u32 %v510, 7
  %v512 = vsub.s32 0, %v511
  %v513 = vrot.slane %v508, %v512
  %v515 = vmul.f32 %v500, %v513
  %v516 = vmul.f32 %v501, %v513
  %v517 = vmul.f32 %v502, %v513
  %v518 = vmul.f32 %v503, %v513
  %v519 = vmul.f32 %v504, %v513
  %v520 = vmul.f32 %v505, %v513
  %v521 = vmul.f32 %v506, %v513
  %v522 = vmul.f32 %v507, %v513
  %v523 = vld [vmem:[%s8] sm:$0x1]
  %v525 = vlaneseq
  %v526 = vshrl.u32 %v525, 7
  %v527 = vsub.s32 0, %v526
  %v528 = vrot.slane %v523, %v527
  %v530 = vadd.f32 %v515, %v528
  %v531 = vadd.f32 %v516, %v528
  %v532 = vadd.f32 %v517, %v528
  %v533 = vadd.f32 %v518, %v528
  %v534 = vadd.f32 %v519, %v528
  %v535 = vadd.f32 %v520, %v528
  %v536 = vadd.f32 %v521, %v528
  %v537 = vadd.f32 %v522, %v528
  %538 = vst.msk [vmem:[%s9] sm:$0xff] %vm68, %v530
  %539 = vst.msk [vmem:[%s9 + $0x8] sm:$0xff] %vm68, %v531
  %540 = vst.msk [vmem:[%s9 + $0x10] sm:$0xff] %vm68, %v532
  %541 = vst.msk [vmem:[%s9 + $0x18] sm:$0xff] %vm68, %v533
  %542 = vst.msk [vmem:[%s9 + $0x20] sm:$0xff] %vm68, %v534
  %543 = vst.msk [vmem:[%s9 + $0x28] sm:$0xff] %vm68, %v535
  %544 = vst.msk [vmem:[%s9 + $0x30] sm:$0xff] %vm68, %v536
  %545 = vst.msk [vmem:[%s9 + $0x38] sm:$0xff] %vm68, %v537
  // Predicated region
  $region38: #{tpu_custom_call.1} parent=0 // pred_check
    _
  $region39: #{tpu_custom_call.1} parent=0 // pred_check_branch
    %547 = sbr.rel (0) target = $region41
  $region40: #{tpu_custom_call.1} parent=0 // pred_region
    _
  $region41: #{tpu_custom_call.1} parent=0 // pred_fallthru
    _
  // Predicated region
  $region42: #{tpu_custom_call.1} parent=0 // pred_check
    _
  $region43: #{tpu_custom_call.1} parent=0 // pred_check_branch
    %549 = sbr.rel (0) target = $region45
  $region44: #{tpu_custom_call.1} parent=0 // pred_region
    _
  $region45: #{tpu_custom_call.1} parent=0 // pred_fallthru
    _

</llo_original>
